<compile_context>
chip_gen: v7x
topology: tpu7x:2x2x1
jax: 0.10.0
libtpu: 0.0.40
codegen_flags: <defaults>
</compile_context>

<pallas_src>
import functools

import jax
import jax.numpy as jnp
from jax.experimental import pallas as pl
from jax.experimental.pallas import tpu as pltpu


# ----------------------------------------------------------------------------
# VMEM budgeting (generation-aware)
# ----------------------------------------------------------------------------
def _vmem_limit_bytes():
    cap = 64 * 1024 * 1024                      # conservative: v7x per-TC VMEM
    try:
        info = pltpu.get_tpu_info()
        cap = int(getattr(info, "vmem_capacity_bytes", cap))
    except Exception:
        pass
    # Leave headroom for Mosaic internal scratch; cap the scoped limit.
    return min((cap * 3) // 4, 96 * 1024 * 1024)


def _pick_tile_h(H, W, C, in_bytes, out_bytes, budget):
    """Row tile for (1, C, TH, W) blocks under a VMEM budget.

    Accounts for double-buffered I/O planes AND the in-kernel f32 temporaries
    (casted inputs, xs_c composites, abs accumulators).
    Returns (tile_h, n_tiles, ragged_last_tile).
    """
    io_per_row = W * ((2 * C + 1) * in_bytes + 2 * C * out_bytes) * 2   # dbl-buffered
    tmp_per_row = W * 4 * (4 * C + 3)                                   # f32 temps
    per_row = max(1, io_per_row + tmp_per_row)
    max_th = max(8, budget // per_row)
    if H <= max_th:
        return H, 1, False                       # single tile == full extent
    align = 16 if out_bytes == 2 else 8          # bf16 packs 16 rows / vreg
    th = max(align, (max_th // align) * align)
    for cand in range(th, align - 1, -align):    # prefer an aligned divisor of H
        if H % cand == 0:
            return cand, H // cand, False
    return th, (H + th - 1) // th, True          # ragged tail handled in-kernel


# ----------------------------------------------------------------------------
# Pallas kernel 1: PatchBlurringModule (learnable depthwise 3x3 blur)
# ----------------------------------------------------------------------------
def _pbm_blur_kernel(tpl_ref, w_ref, out_ref):
    # tpl_ref: (1, C, H+2, W+2) VMEM (zero-padded template)
    # w_ref:   (3, 3) SMEM blur weights
    # out_ref: (1, C, H, W) VMEM
    _, C, H, W = out_ref.shape
    acc = jnp.zeros((C, H, W), jnp.float32)
    for dy in range(3):
        for dx in range(3):
            acc = acc + w_ref[dy, dx] * tpl_ref[0, :, dy:dy + H, dx:dx + W].astype(jnp.float32)
    out_ref[0] = acc.astype(out_ref.dtype)


def pbm_blur(template_img, blur_w):
    # TODO(synk): for large templates the 3x3 taps should use pltpu.roll over a
    # lane-dense layout with an H-tiled grid + 2-row halo; templates here are
    # small so full-spatial blocks are kept.
    B, C, H, W = template_img.shape
    tpl_pad = jnp.pad(template_img, ((0, 0), (0, 0), (1, 1), (1, 1)))
    return pl.pallas_call(
        _pbm_blur_kernel,
        out_shape=jax.ShapeDtypeStruct((B, C, H, W), template_img.dtype),
        grid_spec=pltpu.PrefetchScalarGridSpec(
            num_scalar_prefetch=0,
            grid=(B,),
            in_specs=[
                pl.BlockSpec((1, C, H + 2, W + 2), lambda b: (b, 0, 0, 0)),
                pl.BlockSpec((3, 3), lambda b: (0, 0), memory_space=pltpu.SMEM),
            ],
            out_specs=pl.BlockSpec((1, C, H, W), lambda b: (b, 0, 0, 0)),
        ),
        compiler_params=pltpu.CompilerParams(
            dimension_semantics=("parallel",),
            vmem_limit_bytes=_vmem_limit_bytes()),
    )(tpl_pad, blur_w)


# ----------------------------------------------------------------------------
# Pallas kernel 2 (fused hot path, native layout, row-tiled, flat grid):
#   d_s   = mask * (x_stn - frame);   x_stn_c = frame + d_s
#   x_pct = PCT(x_stn_c)              (3x3 color matrix + bias, on the VPU)
#   d_p   = mask * (x_pct - frame);   x_pct_c = frame + d_p
#   per-(batch,row-tile) L1 partial sums  [sum|d_s|, sum|d_p|]  -> (G, 2) SMEM
# ----------------------------------------------------------------------------
def _pct_compose_kernel(xstn_ref, frame_ref, mask_ref, w_ref, b_ref,
                        xstn_out_ref, xpct_out_ref, sums_ref,
                        *, n_row_tiles, tile_h, img_h, ragged):
    xs = xstn_ref[0].astype(jnp.float32)       # (C, TH, W)
    fr = frame_ref[0].astype(jnp.float32)      # (C, TH, W)
    m = mask_ref[0, 0].astype(jnp.float32)     # (TH, W)
    C, TH, W = xs.shape

    stn_abs = jnp.zeros((TH, W), jnp.float32)
    pct_abs = jnp.zeros((TH, W), jnp.float32)

    # Composite STN output into the frame; reuse the diff for the L1 partials.
    xs_c = []
    for c in range(C):
        d = m * (xs[c] - fr[c])
        comp = fr[c] + d
        xs_c.append(comp)
        xstn_out_ref[0, c] = comp.astype(xstn_out_ref.dtype)
        stn_abs = stn_abs + jnp.abs(d)

    # PCT channel mix (kept on the VPU: C=3 << MXU tile) + composite.
    for c in range(C):
        acc = w_ref[c, 0] * xs_c[0]
        for k in range(1, C):
            acc = acc + w_ref[c, k] * xs_c[k]
        dp = m * (acc + b_ref[c] - fr[c])       # scalar bias folded into the diff
        xpct_out_ref[0, c] = (fr[c] + dp).astype(xpct_out_ref.dtype)
        pct_abs = pct_abs + jnp.abs(dp)

    if ragged:
        # Last row tile overruns H: OOB output writes are dropped by Pallas,
        # but OOB input rows are garbage -> mask their contribution to the sums.
        t = pl.program_id(0) % n_row_tiles
        rows = jax.lax.broadcasted_iota(jnp.int32, (TH, W), 0)
        valid = (t * tile_h + rows) < img_h
        stn_abs = jnp.where(valid, stn_abs, 0.0)
        pct_abs = jnp.where(valid, pct_abs, 0.0)

    sums_ref[0, 0] = jnp.sum(stn_abs)
    sums_ref[0, 1] = jnp.sum(pct_abs)


def pct_compose(x_stn, frame_img, masks, pct_w, pct_b, out_dtype=None):
    B, C, H, W = x_stn.shape
    out_dtype = x_stn.dtype if out_dtype is None else out_dtype

    limit = _vmem_limit_bytes()
    budget = min(limit // 2, 24 * 1024 * 1024)
    in_bytes = jnp.dtype(x_stn.dtype).itemsize
    out_bytes = jnp.dtype(out_dtype).itemsize
    tile_h, n_tiles, ragged = _pick_tile_h(H, W, C, in_bytes, out_bytes, budget)

    G = B * n_tiles                                  # flat grid: even megacore split

    def img_map(g):
        return (g // n_tiles, 0, g % n_tiles, 0)

    kernel = functools.partial(
        _pct_compose_kernel,
        n_row_tiles=n_tiles, tile_h=tile_h, img_h=H, ragged=ragged)

    img_shape = jax.ShapeDtypeStruct((B, C, H, W), out_dtype)
    sum_shape = jax.ShapeDtypeStruct((G, 2), jnp.float32)

    x_stn_o, x_pct_o, sums = pl.pallas_call(
        kernel,
        out_shape=(img_shape, img_shape, sum_shape),
        grid_spec=pltpu.PrefetchScalarGridSpec(
            num_scalar_prefetch=0,
            grid=(G,),
            in_specs=[
                pl.BlockSpec((1, C, tile_h, W), img_map),
                pl.BlockSpec((1, C, tile_h, W), img_map),
                pl.BlockSpec((1, 1, tile_h, W), img_map),
                pl.BlockSpec((C, C), lambda g: (0, 0), memory_space=pltpu.SMEM),
                pl.BlockSpec((C,), lambda g: (0,), memory_space=pltpu.SMEM),
            ],
            out_specs=(
                pl.BlockSpec((1, C, tile_h, W), img_map),
                pl.BlockSpec((1, C, tile_h, W), img_map),
                pl.BlockSpec((1, 2), lambda g: (g, 0), memory_space=pltpu.SMEM),
            ),
        ),
        compiler_params=pltpu.CompilerParams(
            dimension_semantics=("parallel",),
            vmem_limit_bytes=limit),
    )(x_stn, frame_img, masks, pct_w, pct_b)

    # nn.L1Loss() = mean over all elements; padded/OOB rows contribute exactly 0.
    denom = float(B * C * H * W)
    stn_loss = jnp.sum(sums[:, 0]) / denom
    pct_loss = jnp.sum(sums[:, 1]) / denom
    return x_stn_o, x_pct_o, stn_loss, pct_loss


# ----------------------------------------------------------------------------
# STN (affine): tiny localization head + bilinear affine grid_sample (JAX glue)
# ----------------------------------------------------------------------------
def affine_stn(x, template, loc_w, loc_b):
    B, C, H, W = template.shape
    feat = jnp.concatenate([x.mean(axis=(2, 3)), template.mean(axis=(2, 3))], axis=1)  # (B, 2C)
    theta = (feat @ loc_w + loc_b).reshape(B, 2, 3)   # identity-biased affine params

    # affine grid (torch affine_grid, align_corners=False convention)
    ys = (jnp.arange(H, dtype=jnp.float32) + 0.5) / H * 2.0 - 1.0
    xs = (jnp.arange(W, dtype=jnp.float32) + 0.5) / W * 2.0 - 1.0
    gy, gx = jnp.meshgrid(ys, xs, indexing="ij")
    grid = jnp.stack([gx, gy, jnp.ones_like(gx)], axis=-1)          # (H, W, 3)
    coords = jnp.einsum("bij,hwj->bhwi", theta, grid)               # (B, H, W, 2)

    fx = (coords[..., 0] + 1.0) * 0.5 * W - 0.5
    fy = (coords[..., 1] + 1.0) * 0.5 * H - 0.5
    x0f = jnp.floor(fx)
    y0f = jnp.floor(fy)
    wx = fx - x0f
    wy = fy - y0f
    x0 = jnp.clip(x0f.astype(jnp.int32), 0, W - 1)
    x1 = jnp.clip(x0f.astype(jnp.int32) + 1, 0, W - 1)
    y0 = jnp.clip(y0f.astype(jnp.int32), 0, H - 1)
    y1 = jnp.clip(y0f.astype(jnp.int32) + 1, 0, H - 1)

    # TODO(synk): the bilinear warp is a data-dependent per-pixel gather; a
    # Pallas version needs scalar-prefetched row indices or a one-hot-matmul
    # formulation.  Kept in JAX, but flattened to one 1-D take per corner so
    # XLA emits a single gather instead of a dynamic-slice chain.
    def sample_one(img, y0_, y1_, x0_, x1_, wx_, wy_):
        flat = img.reshape(C, H * W)

        def take(yy, xx):
            idx = (yy * W + xx).reshape(-1)
            return jnp.take(flat, idx, axis=1).reshape(C, *yy.shape)

        v00 = take(y0_, x0_)
        v01 = take(y0_, x1_)
        v10 = take(y1_, x0_)
        v11 = take(y1_, x1_)
        return (v00 * (1 - wx_) * (1 - wy_) + v01 * wx_ * (1 - wy_)
                + v10 * (1 - wx_) * wy_ + v11 * wx_ * wy_)

    x_stn = jax.vmap(sample_one)(template, y0, y1, x0, x1, wx, wy)
    return x_stn, theta, None


def transform_template_input(x_stn, bboxes, output_scales):
    # TODO(synk): the original pastes the warped template per-bbox into a
    # frame-sized canvas; spatial sizes match output_scales here, so this
    # reduces to a bilinear resize (bboxes unused).
    B, C = x_stn.shape[:2]
    return jax.image.resize(x_stn, (B, C) + tuple(output_scales), method="bilinear")


# ----------------------------------------------------------------------------
# Parameters (deterministic) and full forward
# ----------------------------------------------------------------------------
def init_params(C=3):
    pbm_w = jnp.array([[1., 2., 1.], [2., 4., 2.], [1., 2., 1.]], jnp.float32) / 16.0
    pct_w = jnp.eye(C, dtype=jnp.float32) * 0.9 + 0.05
    pct_b = jnp.array([0.01, -0.01, 0.005], jnp.float32)[:C]
    loc_w = 0.01 * jnp.arange(2 * C * 6, dtype=jnp.float32).reshape(2 * C, 6) / (2 * C * 6)
    loc_b = jnp.array([1., 0., 0., 0., 1., 0.], jnp.float32)  # identity affine bias
    return dict(pbm_w=pbm_w, pct_w=pct_w, pct_b=pct_b, loc_w=loc_w, loc_b=loc_b)


def forward(params, x, bboxes, masks, template_img, frame_img, scale_factors,
            image_out_dtype=None):
    # PBM (Pallas depthwise blur)
    x_template = pbm_blur(template_img, params["pbm_w"])
    # STN (affine)
    x_stn, _, _ = affine_stn(x, x_template, params["loc_w"], params["loc_b"])
    output_scales = frame_img.shape[2:]
    x_stn = transform_template_input(x_stn, bboxes, output_scales)
    # Fused Pallas hot path: compositing + PCT color mix + compositing + L1 losses
    x_stn_c, x_pct_c, stn_loss, pct_loss = pct_compose(
        x_stn, frame_img, masks, params["pct_w"], params["pct_b"],
        out_dtype=image_out_dtype)
    # use_LCT=False  -> x_lct is None, lct_loss = zeros(B)
    lct_loss = jnp.zeros((x.shape[0],), jnp.float32)
    return {"STN": (x_stn_c, stn_loss),
            "PCT": (x_pct_c, pct_loss),
            "LCT": (None, lct_loss)}


# ----------------------------------------------------------------------------
# Pure-JAX reference (for in-script numerical validation of the Pallas kernels)
# ----------------------------------------------------------------------------
def _blur_ref(t, w):
    B, C, H, W = t.shape
    tp = jnp.pad(t, ((0, 0), (0, 0), (1, 1), (1, 1)))
    out = jnp.zeros_like(t)
    for dy in range(3):
        for dx in range(3):
            out = out + w[dy, dx] * tp[:, :, dy:dy + H, dx:dx + W]
    return out


def _compose_ref(x_stn, frame_img, masks, pct_w, pct_b):
    xs_c = x_stn * masks + frame_img * (1.0 - masks)
    xp = jnp.einsum("ck,bkhw->bchw", pct_w, xs_c) + pct_b[None, :, None, None]
    xp_c = xp * masks + frame_img * (1.0 - masks)
    return (xs_c, xp_c,
            jnp.mean(jnp.abs(xs_c - frame_img)),
            jnp.mean(jnp.abs(xp_c - frame_img)))


if __name__ == "__main__":
    key = jax.random.PRNGKey(0)
    B, C, H, W = 2, 3, 16, 16
    k = jax.random.split(key, 4)
    x = jax.random.uniform(k[0], (B, C, H, W), jnp.float32)
    template_img = jax.random.uniform(k[1], (B, C, H, W), jnp.float32)
    frame_img = jax.random.uniform(k[2], (B, C, H, W), jnp.float32)
    masks = (jax.random.uniform(k[3], (B, 1, H, W)) > 0.5).astype(jnp.float32)
    bboxes = jnp.tile(jnp.array([[0, 0, H, W]], jnp.int32), (B, 1))
    scale_factors = jnp.ones((B,), jnp.float32)

    params = init_params(C)
    out = forward(params, x, bboxes, masks, template_img, frame_img, scale_factors)
    jax.block_until_ready(out)

    x_stn_c, stn_loss = out["STN"]
    x_pct_c, pct_loss = out["PCT"]
    assert x_stn_c.shape == (B, C, H, W) and x_pct_c.shape == (B, C, H, W)
    assert jnp.isfinite(stn_loss) and jnp.isfinite(pct_loss)

    # Validate the Pallas kernels against a pure-JAX reference of the same math.
    x_t_ref = _blur_ref(template_img, params["pbm_w"])
    assert jnp.allclose(pbm_blur(template_img, params["pbm_w"]), x_t_ref,
                        rtol=1e-5, atol=1e-5)
    x_stn_ref, _, _ = affine_stn(x, x_t_ref, params["loc_w"], params["loc_b"])
    x_stn_ref = transform_template_input(x_stn_ref, bboxes, frame_img.shape[2:])
    r_stn, r_pct, r_sl, r_pl = _compose_ref(
        x_stn_ref, frame_img, masks, params["pct_w"], params["pct_b"])
    assert jnp.allclose(x_stn_c, r_stn, rtol=1e-5, atol=1e-5)
    assert jnp.allclose(x_pct_c, r_pct, rtol=1e-5, atol=1e-5)
    assert jnp.allclose(stn_loss, r_sl, rtol=1e-5, atol=1e-5)
    assert jnp.allclose(pct_loss, r_pl, rtol=1e-5, atol=1e-5)

    print("KERNEL_OK")
</pallas_src>

<mosaic_0001>
module attributes {stable_mosaic.version = 11 : i64} {
  func.func @_pbm_blur_kernel(%arg0: i32, %arg1: memref<1x3x18x18xf32, #tpu.memory_space<vmem>>, %arg2: memref<3x3xf32, #tpu.memory_space<smem>>, %arg3: memref<1x3x16x16xf32, #tpu.memory_space<vmem>>) attributes {dimension_semantics = [#tpu.dimension_semantics<parallel>], iteration_bounds = array<i64: 2>, scalar_prefetch = 0 : i64, scratch_operands = 0 : i64, tpu.core_type = #tpu.core_type<tc>, window_params = [{transform_indices = @transform_0, window_bounds = array<i64: 1, 3, 18, 18>}, {transform_indices = @transform_1, window_bounds = array<i64: 3, 3>}, {transform_indices = @transform_2, window_bounds = array<i64: 1, 3, 16, 16>}]} {
    %cst = arith.constant 0.000000e+00 : f32
    %0 = vector.broadcast %cst : f32 to vector<3x16x16xf32>
    %c0 = arith.constant 0 : index
    %c0_0 = arith.constant 0 : index
    %1 = memref.load %arg2[%c0, %c0_0] : memref<3x3xf32, #tpu.memory_space<smem>>
    %c0_1 = arith.constant 0 : index
    %c0_2 = arith.constant 0 : index
    %c0_3 = arith.constant 0 : index
    %c0_4 = arith.constant 0 : index
    %2 = vector.load %arg1[%c0_1, %c0_2, %c0_3, %c0_4] : memref<1x3x18x18xf32, #tpu.memory_space<vmem>>, vector<1x3x16x16xf32>
    %3 = vector.shape_cast %2 : vector<1x3x16x16xf32> to vector<3x16x16xf32>
    %4 = vector.broadcast %1 : f32 to vector<3x16x16xf32>
    %5 = arith.mulf %4, %3 : vector<3x16x16xf32>
    %6 = arith.addf %0, %5 : vector<3x16x16xf32>
    %c0_5 = arith.constant 0 : index
    %c1 = arith.constant 1 : index
    %7 = memref.load %arg2[%c0_5, %c1] : memref<3x3xf32, #tpu.memory_space<smem>>
    %c0_6 = arith.constant 0 : index
    %c0_7 = arith.constant 0 : index
    %c0_8 = arith.constant 0 : index
    %c1_9 = arith.constant 1 : index
    %8 = vector.load %arg1[%c0_6, %c0_7, %c0_8, %c1_9] : memref<1x3x18x18xf32, #tpu.memory_space<vmem>>, vector<1x3x16x16xf32>
    %9 = vector.shape_cast %8 : vector<1x3x16x16xf32> to vector<3x16x16xf32>
    %10 = vector.broadcast %7 : f32 to vector<3x16x16xf32>
    %11 = arith.mulf %10, %9 : vector<3x16x16xf32>
    %12 = arith.addf %6, %11 : vector<3x16x16xf32>
    %c0_10 = arith.constant 0 : index
    %c2 = arith.constant 2 : index
    %13 = memref.load %arg2[%c0_10, %c2] : memref<3x3xf32, #tpu.memory_space<smem>>
    %c0_11 = arith.constant 0 : index
    %c0_12 = arith.constant 0 : index
    %c0_13 = arith.constant 0 : index
    %c2_14 = arith.constant 2 : index
    %14 = vector.load %arg1[%c0_11, %c0_12, %c0_13, %c2_14] : memref<1x3x18x18xf32, #tpu.memory_space<vmem>>, vector<1x3x16x16xf32>
    %15 = vector.shape_cast %14 : vector<1x3x16x16xf32> to vector<3x16x16xf32>
    %16 = vector.broadcast %13 : f32 to vector<3x16x16xf32>
    %17 = arith.mulf %16, %15 : vector<3x16x16xf32>
    %18 = arith.addf %12, %17 : vector<3x16x16xf32>
    %c1_15 = arith.constant 1 : index
    %c0_16 = arith.constant 0 : index
    %19 = memref.load %arg2[%c1_15, %c0_16] : memref<3x3xf32, #tpu.memory_space<smem>>
    %c0_17 = arith.constant 0 : index
    %c0_18 = arith.constant 0 : index
    %c1_19 = arith.constant 1 : index
    %c0_20 = arith.constant 0 : index
    %20 = vector.load %arg1[%c0_17, %c0_18, %c1_19, %c0_20] : memref<1x3x18x18xf32, #tpu.memory_space<vmem>>, vector<1x3x16x16xf32>
    %21 = vector.shape_cast %20 : vector<1x3x16x16xf32> to vector<3x16x16xf32>
    %22 = vector.broadcast %19 : f32 to vector<3x16x16xf32>
    %23 = arith.mulf %22, %21 : vector<3x16x16xf32>
    %24 = arith.addf %18, %23 : vector<3x16x16xf32>
    %c1_21 = arith.constant 1 : index
    %c1_22 = arith.constant 1 : index
    %25 = memref.load %arg2[%c1_21, %c1_22] : memref<3x3xf32, #tpu.memory_space<smem>>
    %c0_23 = arith.constant 0 : index
    %c0_24 = arith.constant 0 : index
    %c1_25 = arith.constant 1 : index
    %c1_26 = arith.constant 1 : index
    %26 = vector.load %arg1[%c0_23, %c0_24, %c1_25, %c1_26] : memref<1x3x18x18xf32, #tpu.memory_space<vmem>>, vector<1x3x16x16xf32>
    %27 = vector.shape_cast %26 : vector<1x3x16x16xf32> to vector<3x16x16xf32>
    %28 = vector.broadcast %25 : f32 to vector<3x16x16xf32>
    %29 = arith.mulf %28, %27 : vector<3x16x16xf32>
    %30 = arith.addf %24, %29 : vector<3x16x16xf32>
    %c1_27 = arith.constant 1 : index
    %c2_28 = arith.constant 2 : index
    %31 = memref.load %arg2[%c1_27, %c2_28] : memref<3x3xf32, #tpu.memory_space<smem>>
    %c0_29 = arith.constant 0 : index
    %c0_30 = arith.constant 0 : index
    %c1_31 = arith.constant 1 : index
    %c2_32 = arith.constant 2 : index
    %32 = vector.load %arg1[%c0_29, %c0_30, %c1_31, %c2_32] : memref<1x3x18x18xf32, #tpu.memory_space<vmem>>, vector<1x3x16x16xf32>
    %33 = vector.shape_cast %32 : vector<1x3x16x16xf32> to vector<3x16x16xf32>
    %34 = vector.broadcast %31 : f32 to vector<3x16x16xf32>
    %35 = arith.mulf %34, %33 : vector<3x16x16xf32>
    %36 = arith.addf %30, %35 : vector<3x16x16xf32>
    %c2_33 = arith.constant 2 : index
    %c0_34 = arith.constant 0 : index
    %37 = memref.load %arg2[%c2_33, %c0_34] : memref<3x3xf32, #tpu.memory_space<smem>>
    %c0_35 = arith.constant 0 : index
    %c0_36 = arith.constant 0 : index
    %c2_37 = arith.constant 2 : index
    %c0_38 = arith.constant 0 : index
    %38 = vector.load %arg1[%c0_35, %c0_36, %c2_37, %c0_38] : memref<1x3x18x18xf32, #tpu.memory_space<vmem>>, vector<1x3x16x16xf32>
    %39 = vector.shape_cast %38 : vector<1x3x16x16xf32> to vector<3x16x16xf32>
    %40 = vector.broadcast %37 : f32 to vector<3x16x16xf32>
    %41 = arith.mulf %40, %39 : vector<3x16x16xf32>
    %42 = arith.addf %36, %41 : vector<3x16x16xf32>
    %c2_39 = arith.constant 2 : index
    %c1_40 = arith.constant 1 : index
    %43 = memref.load %arg2[%c2_39, %c1_40] : memref<3x3xf32, #tpu.memory_space<smem>>
    %c0_41 = arith.constant 0 : index
    %c0_42 = arith.constant 0 : index
    %c2_43 = arith.constant 2 : index
    %c1_44 = arith.constant 1 : index
    %44 = vector.load %arg1[%c0_41, %c0_42, %c2_43, %c1_44] : memref<1x3x18x18xf32, #tpu.memory_space<vmem>>, vector<1x3x16x16xf32>
    %45 = vector.shape_cast %44 : vector<1x3x16x16xf32> to vector<3x16x16xf32>
    %46 = vector.broadcast %43 : f32 to vector<3x16x16xf32>
    %47 = arith.mulf %46, %45 : vector<3x16x16xf32>
    %48 = arith.addf %42, %47 : vector<3x16x16xf32>
    %c2_45 = arith.constant 2 : index
    %c2_46 = arith.constant 2 : index
    %49 = memref.load %arg2[%c2_45, %c2_46] : memref<3x3xf32, #tpu.memory_space<smem>>
    %c0_47 = arith.constant 0 : index
    %c0_48 = arith.constant 0 : index
    %c2_49 = arith.constant 2 : index
    %c2_50 = arith.constant 2 : index
    %50 = vector.load %arg1[%c0_47, %c0_48, %c2_49, %c2_50] : memref<1x3x18x18xf32, #tpu.memory_space<vmem>>, vector<1x3x16x16xf32>
    %51 = vector.shape_cast %50 : vector<1x3x16x16xf32> to vector<3x16x16xf32>
    %52 = vector.broadcast %49 : f32 to vector<3x16x16xf32>
    %53 = arith.mulf %52, %51 : vector<3x16x16xf32>
    %54 = arith.addf %48, %53 : vector<3x16x16xf32>
    %c0_51 = arith.constant 0 : index
    %c0_52 = arith.constant 0 : index
    %c0_53 = arith.constant 0 : index
    %c0_54 = arith.constant 0 : index
    %55 = vector.load %arg3[%c0_51, %c0_52, %c0_53, %c0_54] : memref<1x3x16x16xf32, #tpu.memory_space<vmem>>, vector<1x3x16x16xf32>
    %56 = vector.shape_cast %55 : vector<1x3x16x16xf32> to vector<3x16x16xf32>
    %57 = vector.shape_cast %54 : vector<3x16x16xf32> to vector<1x3x16x16xf32>
    tpu.vector_store %arg3[%c0_51, %c0_52, %c0_53, %c0_54], %57 {strides = array<i32>} : memref<1x3x16x16xf32, #tpu.memory_space<vmem>>, vector<1x3x16x16xf32>,
    return
  }
  func.func @transform_0(%arg0: i32) -> (i32, i32, i32, i32) {
    %c0_i32 = arith.constant 0 : i32
    %c0_i32_0 = arith.constant 0 : i32
    %c0_i32_1 = arith.constant 0 : i32
    %c0_i32_2 = arith.constant 0 : i32
    return %arg0, %c0_i32, %c0_i32_0, %c0_i32_1 : i32, i32, i32, i32
  }
  func.func @transform_1(%arg0: i32) -> (i32, i32) {
    %c0_i32 = arith.constant 0 : i32
    %c0_i32_0 = arith.constant 0 : i32
    %c0_i32_1 = arith.constant 0 : i32
    return %c0_i32, %c0_i32_0 : i32, i32
  }
  func.func @transform_2(%arg0: i32) -> (i32, i32, i32, i32) {
    %c0_i32 = arith.constant 0 : i32
    %c0_i32_0 = arith.constant 0 : i32
    %c0_i32_1 = arith.constant 0 : i32
    %c0_i32_2 = arith.constant 0 : i32
    return %arg0, %c0_i32, %c0_i32_0, %c0_i32_1 : i32, i32, i32, i32
  }
}

</mosaic_0001>

<llo_original>
// kernel: tpu_custom_call.1
$region0: #{tpu_custom_call.1}
  #allocation0 [shape = 'u32[]', space=smem, size = 0x4, offset = 0x4, fixed_abs, tag = 'smem constant byte address 0x4 - core index']
  #allocation1 [shape = 'u32[144,128]{1,0:T(1,128)}', space=vmem, size = 0x12000, scoped, tag = 'internal scratch']
  %s0 = inlined_call_operand.vmem [shape: f32[2,3,18,18], index: 0, kind: input, shape index: {}]
  %s1 = inlined_call_operand.vmem [shape: f32[3,3], index: 1, kind: input, shape index: {}]
  %s2 = inlined_call_operand.hbm [shape: f32[2,3,16,16], index: 2, kind: output, shape index: {}]
  %s3 = sld [smem:[#allocation0]]
  $region45: #{tpu_custom_call.1} parent=0
    _
  %s5 = ssub.s32 1, %s3
  %s6 = scalar_select 0, %s5, %s3
  $region1: #{tpu_custom_call.1} parent=0
    #allocation2 [shape = 'u8[2048]{0}', space=smem, size = 0x800, scoped, tag = 'input window, operand 1, single buffered']
    #allocation3 [shape = 's32[2]{0}', space=sflag, size = 0x8, scoped, tag = 'scoped memory for tpu_custom_call.1']
    #allocation4 [shape = 's32[2]{0}', space=sflag, size = 0x8, scoped, tag = 'scoped memory for tpu_custom_call.1']
    #allocation5 [shape = 'u8[49152]{0}', space=vmem, size = 0xc000, scoped, tag = 'output window, operand 0']
    %7 = vsyncpa [#allocation4], 0
    %8 = vsyncpa [#allocation3], 0
    %s9 = scalar_lea.sflag [#allocation3], 1
    %10 = vsyncpa %s9, 0
    loop: start=0, step=1, limit=4
    $region2: #{tpu_custom_call.1} parent=1 // loop_pre_header
      _
    $region3: #{tpu_custom_call.1} parent=1 // loop_header
      %s12 = sphi 0, %s16
      %p13 = scmp.ge.s32.totalorder %s12, 4
      %s22 = sphi 0, %s24
      %s25 = sphi 0, %s22
      %s26 = sphi 0, %s25
      %s42 = sphi 0, %s26
      %s46 = sphi 0, %s46
      %s48 = sphi 0, %s46
      %s49 = sphi 0, %s48
      %s63 = sphi 0, %s49
      %s69 = sphi 0, %s71
      %s72 = sphi 0, %s69
      %s73 = sphi 0, %s72
      %s89 = sphi 0, %s73
    $region4: #{tpu_custom_call.1} parent=1 // loop_header_branch
      %15 = sbr.rel (%p13) target = $region8
    $region5: #{tpu_custom_call.1} parent=1 // loop_body
      %s17 = ssub.s32 %s12, 1
      %s18 = ssub.s32 %s12, 2
      %s19 = sadd.s32 %s12, 1
      %s20 = ssub.s32 %s12, %s19
      %p21 = scmp.eq.s32.totalorder %s20, 0
      %s23 = sadd.s32 %s22, 1
      %s24 = scalar_select %p21, %s22, %s23
      %p27 = pneg %p21
      %p28 = scmp.eq.s32.totalorder %s12, 1
      %p29 = por %p27, %p28
      %p30 = scmp.ne.s32.totalorder %s22, %s25
      %p31 = scmp.eq.s32.totalorder %s12, 0
      %p32 = por %p30, %p31
      %p33 = scmp.ne.s32.totalorder %s22, %s25
      %p34 = scmp.eq.s32.totalorder %s17, 1
      %p35 = por %p33, %p34
      %p36 = scmp.ne.s32.totalorder %s25, %s26
      %p37 = scmp.eq.s32.totalorder %s17, 0
      %p38 = por %p36, %p37
      %p39 = scmp.ne.s32.totalorder %s25, %s26
      %p40 = scmp.eq.s32.totalorder %s18, 1
      %p41 = por %p39, %p40
      %p43 = scmp.ne.s32.totalorder %s26, %s42
      %p44 = scmp.eq.s32.totalorder %s18, 0
      %p45 = por %p43, %p44
      %s47 = sadd.s32 %s46, 1
      %p50 = scmp.eq.s32.totalorder %s12, 1
      %p51 = scmp.ne.s32.totalorder %s46, %s48
      %p52 = scmp.eq.s32.totalorder %s12, 0
      %p53 = por %p51, %p52
      %p54 = scmp.ne.s32.totalorder %s46, %s48
      %p55 = scmp.eq.s32.totalorder %s17, 1
      %p56 = por %p54, %p55
      %p57 = scmp.ne.s32.totalorder %s48, %s49
      %p58 = scmp.eq.s32.totalorder %s17, 0
      %p59 = por %p57, %p58
      %p60 = scmp.ne.s32.totalorder %s48, %s49
      %p61 = scmp.eq.s32.totalorder %s18, 1
      %p62 = por %p60, %p61
      %p64 = scmp.ne.s32.totalorder %s49, %s63
      %p65 = scmp.eq.s32.totalorder %s18, 0
      %p66 = por %p64, %p65
      %s67 = ssub.s32 %s12, %s19
      %p68 = scmp.eq.s32.totalorder %s67, 0
      %s70 = sadd.s32 %s69, 1
      %s71 = scalar_select %p68, %s69, %s70
      %p74 = pneg %p68
      %p75 = scmp.eq.s32.totalorder %s12, 1
      %p76 = por %p74, %p75
      %p77 = scmp.ne.s32.totalorder %s69, %s72
      %p78 = scmp.eq.s32.totalorder %s12, 0
      %p79 = por %p77, %p78
      %p80 = scmp.ne.s32.totalorder %s69, %s72
      %p81 = scmp.eq.s32.totalorder %s17, 1
      %p82 = por %p80, %p81
      %p83 = scmp.ne.s32.totalorder %s72, %s73
      %p84 = scmp.eq.s32.totalorder %s17, 0
      %p85 = por %p83, %p84
      %p86 = scmp.ne.s32.totalorder %s72, %s73
      %p87 = scmp.eq.s32.totalorder %s18, 1
      %p88 = por %p86, %p87
      %p90 = scmp.ne.s32.totalorder %s73, %s89
      %p91 = scmp.eq.s32.totalorder %s18, 0
      %p92 = por %p90, %p91
      %p93 = scmp.le.s32.totalorder 1, %s12
      %p94 = scmp.lt.s32.totalorder %s12, 3
      %p95 = pnand %p93, %p94
      %p96 = pneg %p95
      // Predicated region
      $region9: #{tpu_custom_call.1} parent=5 // pred_check
        _
      $region10: #{tpu_custom_call.1} parent=5 // pred_check_branch
        %98 = sbr.rel (%p95) target = $region12
      $region11: #{tpu_custom_call.1} parent=5 // pred_region
        %s99 = ssub.s32 %s12, 1
        // Predicated region
        $region13: #{tpu_custom_call.1} parent=11 // pred_check
          %p100 = pneg %p59
        $region14: #{tpu_custom_call.1} parent=11 // pred_check_branch
          %102 = sbr.rel (%p100) target = $region16
        $region15: #{tpu_custom_call.1} parent=11 // pred_region
          %s104 = ssub.s32 64, 64
          %105 = vsyncadd [#allocation4], %s104
          %s107 = sshll.u32 %s1, 4
          %s108 = int_to_ptr.vmem [resolvable:$true] %s107
          %110 = dma.vmem_to_smem %s108, 64, [#allocation2], [#allocation4]
        $region16: #{tpu_custom_call.1} parent=11 // pred_fallthru
          _
      $region12: #{tpu_custom_call.1} parent=5 // pred_fallthru
        _
      %p111 = scmp.lt.s32.totalorder %s12, 2
      // Predicated region
      $region17: #{tpu_custom_call.1} parent=5 // pred_check
        %p112 = pneg %p111
      $region18: #{tpu_custom_call.1} parent=5 // pred_check_branch
        %114 = sbr.rel (%p112) target = $region20
      $region19: #{tpu_custom_call.1} parent=5 // pred_region
        // Predicated region
        $region21: #{tpu_custom_call.1} parent=19 // pred_check
          %p115 = pneg %p32
        $region22: #{tpu_custom_call.1} parent=19 // pred_check_branch
          %117 = sbr.rel (%p115) target = $region24
        $region23: #{tpu_custom_call.1} parent=19 // pred_region
          %p118 = scmp.lt.s32.totalorder %s12, 1
          %s119 = scalar_select %p118, %s12, 1
          %s120 = smul.addr %s119, 9
          %s121 = smul.addr %s120, 8
          %s122 = scalar_lea.vmem %s0, %s121
        $region24: #{tpu_custom_call.1} parent=19 // pred_fallthru
          _
      $region20: #{tpu_custom_call.1} parent=5 // pred_fallthru
        _
      %p123 = scmp.le.s32.totalorder 1, %s12
      %p124 = scmp.lt.s32.totalorder %s12, 3
      %p125 = pnand %p123, %p124
      %p126 = pneg %p125
      // Predicated region
      $region25: #{tpu_custom_call.1} parent=5 // pred_check
        _
      $region26: #{tpu_custom_call.1} parent=5 // pred_check_branch
        %128 = sbr.rel (%p125) target = $region28
      $region27: #{tpu_custom_call.1} parent=5 // pred_region
        %s129 = ssub.s32 %s12, 1
        // Predicated region
        $region29: #{tpu_custom_call.1} parent=27 // pred_check
          %p130 = pneg %p59
        $region30: #{tpu_custom_call.1} parent=27 // pred_check_branch
          %132 = sbr.rel (%p130) target = $region32
        $region31: #{tpu_custom_call.1} parent=27 // pred_region
          %133 = dma.done [#allocation4], 64
        $region32: #{tpu_custom_call.1} parent=27 // pred_fallthru
          _
        %134 = sfence
        %p135 = scmp.lt.s32.totalorder %s17, 1
        %s136 = scalar_select %p135, %s17, 1
        %s137 = smul.addr %s136, 9
        %s138 = smul.addr %s137, 8
        %s139 = scalar_lea.vmem %s0, %s138
        %p140 = pneg %p38
        %p141 = pneg %p35
        %p142 = pneg %p59
        %p143 = pneg %p56
        %p144 = pneg %p85
        %p145 = pneg %p82
        %s146 = sand.u32 %s72, 1
        %s147 = scalar_lea.sflag [#allocation3], %s146
        %s148 = sand.u32 %s72, 1
        %s149 = smul.addr %s148, 48
        %s150 = scalar_lea.vmem [#allocation5], %s149
        %p151 = scmp.lt.s32.totalorder %s17, 1
        %s152 = scalar_select %p151, %s17, 1
        %s153 = smul.addr %s152, 9
        %s154 = smul.addr %s153, 8
        %s155 = scalar_lea.vmem %s0, %s154
        %s156 = sld [smem:[#allocation2]]
        %v157 = vld [vmem:[%s155] sm:$0xff]
        %v158 = vld [vmem:[%s155 + $0x8] sm:$0xff]
        %v159 = vld [vmem:[%s155 + $0x18] sm:$0xff]
        %v160 = vld [vmem:[%s155 + $0x20] sm:$0xff]
        %v161 = vld [vmem:[%s155 + $0x30] sm:$0xff]
        %v162 = vld [vmem:[%s155 + $0x38] sm:$0xff]
        %v163 = vstv %s156
        %v164 = vmul.f32 %v163, %v157
        %v165 = vmul.f32 %v163, %v158
        %v166 = vmul.f32 %v163, %v159
        %v167 = vmul.f32 %v163, %v160
        %v168 = vmul.f32 %v163, %v161
        %v169 = vmul.f32 %v163, %v162
        %v170 = vadd.f32 %v164, 0.0
        %v171 = vadd.f32 %v165, 0.0
        %v172 = vadd.f32 %v166, 0.0
        %v173 = vadd.f32 %v167, 0.0
        %v174 = vadd.f32 %v168, 0.0
        %v175 = vadd.f32 %v169, 0.0
        %s176 = sld [smem:[#allocation2 + $0x1]]
        %v177 = vstv %s176
        %v178 = vmul.f32 %v177, %v157
        %v179 = vmul.f32 %v177, %v158
        %v180 = vmul.f32 %v177, %v159
        %v181 = vmul.f32 %v177, %v160
        %v182 = vmul.f32 %v177, %v161
        %v183 = vmul.f32 %v177, %v162
        %190 = vrot.lane.b32.xlu0 %v178, 127
        %v191 = vpop.permute.xlu0 %190
        %192 = vrot.lane.b32.xlu0 %v179, 127
        %v193 = vpop.permute.xlu0 %192
        %194 = vrot.lane.b32.xlu0 %v180, 127
        %v195 = vpop.permute.xlu0 %194
        %196 = vrot.lane.b32.xlu0 %v181, 127
        %v197 = vpop.permute.xlu0 %196
        %198 = vrot.lane.b32.xlu0 %v182, 127
        %v199 = vpop.permute.xlu0 %198
        %200 = vrot.lane.b32.xlu0 %v183, 127
        %v201 = vpop.permute.xlu0 %200
        %v208 = vadd.f32 %v170, %v191
        %v209 = vadd.f32 %v171, %v193
        %v210 = vadd.f32 %v172, %v195
        %v211 = vadd.f32 %v173, %v197
        %v212 = vadd.f32 %v174, %v199
        %v213 = vadd.f32 %v175, %v201
        %s214 = sld [smem:[#allocation2 + $0x2]]
        %v215 = vstv %s214
        %v216 = vmul.f32 %v215, %v157
        %v217 = vmul.f32 %v215, %v158
        %v218 = vmul.f32 %v215, %v159
        %v219 = vmul.f32 %v215, %v160
        %v220 = vmul.f32 %v215, %v161
        %v221 = vmul.f32 %v215, %v162
        %228 = vrot.lane.b32.xlu0 %v216, 126
        %v229 = vpop.permute.xlu0 %228
        %230 = vrot.lane.b32.xlu0 %v217, 126
        %v231 = vpop.permute.xlu0 %230
        %232 = vrot.lane.b32.xlu0 %v218, 126
        %v233 = vpop.permute.xlu0 %232
        %234 = vrot.lane.b32.xlu0 %v219, 126
        %v235 = vpop.permute.xlu0 %234
        %236 = vrot.lane.b32.xlu0 %v220, 126
        %v237 = vpop.permute.xlu0 %236
        %238 = vrot.lane.b32.xlu0 %v221, 126
        %v239 = vpop.permute.xlu0 %238
        %v246 = vadd.f32 %v208, %v229
        %v247 = vadd.f32 %v209, %v231
        %v248 = vadd.f32 %v210, %v233
        %v249 = vadd.f32 %v211, %v235
        %v250 = vadd.f32 %v212, %v237
        %v251 = vadd.f32 %v213, %v239
        %s252 = sld [smem:[#allocation2 + $0x80]]
        %v253 = vld [vmem:[%s155 + $0x1] sm:$0xff]
        %v254 = vld [vmem:[%s155 + $0x9] sm:$0xff]
        %v255 = vld [vmem:[%s155 + $0x19] sm:$0xff]
        %v256 = vld [vmem:[%s155 + $0x21] sm:$0xff]
        %v257 = vld [vmem:[%s155 + $0x31] sm:$0xff]
        %v258 = vld [vmem:[%s155 + $0x39] sm:$0xff]
        %v259 = vstv %s252
        %v260 = vmul.f32 %v259, %v253
        %v261 = vmul.f32 %v259, %v254
        %v262 = vmul.f32 %v259, %v255
        %v263 = vmul.f32 %v259, %v256
        %v264 = vmul.f32 %v259, %v257
        %v265 = vmul.f32 %v259, %v258
        %v266 = vadd.f32 %v246, %v260
        %v267 = vadd.f32 %v247, %v261
        %v268 = vadd.f32 %v248, %v262
        %v269 = vadd.f32 %v249, %v263
        %v270 = vadd.f32 %v250, %v264
        %v271 = vadd.f32 %v251, %v265
        %s272 = sld [smem:[#allocation2 + $0x81]]
        %v273 = vstv %s272
        %v274 = vmul.f32 %v273, %v253
        %v275 = vmul.f32 %v273, %v254
        %v276 = vmul.f32 %v273, %v255
        %v277 = vmul.f32 %v273, %v256
        %v278 = vmul.f32 %v273, %v257
        %v279 = vmul.f32 %v273, %v258
        %286 = vrot.lane.b32.xlu0 %v274, 127
        %v287 = vpop.permute.xlu0 %286
        %288 = vrot.lane.b32.xlu0 %v275, 127
        %v289 = vpop.permute.xlu0 %288
        %290 = vrot.lane.b32.xlu0 %v276, 127
        %v291 = vpop.permute.xlu0 %290
        %292 = vrot.lane.b32.xlu0 %v277, 127
        %v293 = vpop.permute.xlu0 %292
        %294 = vrot.lane.b32.xlu0 %v278, 127
        %v295 = vpop.permute.xlu0 %294
        %296 = vrot.lane.b32.xlu0 %v279, 127
        %v297 = vpop.permute.xlu0 %296
        %v304 = vadd.f32 %v266, %v287
        %v305 = vadd.f32 %v267, %v289
        %v306 = vadd.f32 %v268, %v291
        %v307 = vadd.f32 %v269, %v293
        %v308 = vadd.f32 %v270, %v295
        %v309 = vadd.f32 %v271, %v297
        %s310 = sld [smem:[#allocation2 + $0x82]]
        %v311 = vstv %s310
        %v312 = vmul.f32 %v311, %v253
        %v313 = vmul.f32 %v311, %v254
        %v314 = vmul.f32 %v311, %v255
        %v315 = vmul.f32 %v311, %v256
        %v316 = vmul.f32 %v311, %v257
        %v317 = vmul.f32 %v311, %v258
        %324 = vrot.lane.b32.xlu0 %v312, 126
        %v325 = vpop.permute.xlu0 %324
        %326 = vrot.lane.b32.xlu0 %v313, 126
        %v327 = vpop.permute.xlu0 %326
        %328 = vrot.lane.b32.xlu0 %v314, 126
        %v329 = vpop.permute.xlu0 %328
        %330 = vrot.lane.b32.xlu0 %v315, 126
        %v331 = vpop.permute.xlu0 %330
        %332 = vrot.lane.b32.xlu0 %v316, 126
        %v333 = vpop.permute.xlu0 %332
        %334 = vrot.lane.b32.xlu0 %v317, 126
        %v335 = vpop.permute.xlu0 %334
        %v342 = vadd.f32 %v304, %v325
        %v343 = vadd.f32 %v305, %v327
        %v344 = vadd.f32 %v306, %v329
        %v345 = vadd.f32 %v307, %v331
        %v346 = vadd.f32 %v308, %v333
        %v347 = vadd.f32 %v309, %v335
        %s348 = sld [smem:[#allocation2 + $0x100]]
        %v349 = vld [vmem:[%s155 + $0x2] sm:$0xff]
        %v350 = vld [vmem:[%s155 + $0xa] sm:$0xff]
        %v351 = vld [vmem:[%s155 + $0x1a] sm:$0xff]
        %v352 = vld [vmem:[%s155 + $0x22] sm:$0xff]
        %v353 = vld [vmem:[%s155 + $0x32] sm:$0xff]
        %v354 = vld [vmem:[%s155 + $0x3a] sm:$0xff]
        %v355 = vstv %s348
        %v356 = vmul.f32 %v355, %v349
        %v357 = vmul.f32 %v355, %v350
        %v358 = vmul.f32 %v355, %v351
        %v359 = vmul.f32 %v355, %v352
        %v360 = vmul.f32 %v355, %v353
        %v361 = vmul.f32 %v355, %v354
        %v362 = vadd.f32 %v342, %v356
        %v363 = vadd.f32 %v343, %v357
        %v364 = vadd.f32 %v344, %v358
        %v365 = vadd.f32 %v345, %v359
        %v366 = vadd.f32 %v346, %v360
        %v367 = vadd.f32 %v347, %v361
        %s368 = sld [smem:[#allocation2 + $0x101]]
        %v369 = vstv %s368
        %v370 = vmul.f32 %v369, %v349
        %v371 = vmul.f32 %v369, %v350
        %v372 = vmul.f32 %v369, %v351
        %v373 = vmul.f32 %v369, %v352
        %v374 = vmul.f32 %v369, %v353
        %v375 = vmul.f32 %v369, %v354
        %382 = vrot.lane.b32.xlu0 %v370, 127
        %v383 = vpop.permute.xlu0 %382
        %384 = vrot.lane.b32.xlu0 %v371, 127
        %v385 = vpop.permute.xlu0 %384
        %386 = vrot.lane.b32.xlu0 %v372, 127
        %v387 = vpop.permute.xlu0 %386
        %388 = vrot.lane.b32.xlu0 %v373, 127
        %v389 = vpop.permute.xlu0 %388
        %390 = vrot.lane.b32.xlu0 %v374, 127
        %v391 = vpop.permute.xlu0 %390
        %392 = vrot.lane.b32.xlu0 %v375, 127
        %v393 = vpop.permute.xlu0 %392
        %v400 = vadd.f32 %v362, %v383
        %v401 = vadd.f32 %v363, %v385
        %v402 = vadd.f32 %v364, %v387
        %v403 = vadd.f32 %v365, %v389
        %v404 = vadd.f32 %v366, %v391
        %v405 = vadd.f32 %v367, %v393
        %s406 = sld [smem:[#allocation2 + $0x102]]
        %v407 = vstv %s406
        %v408 = vmul.f32 %v407, %v349
        %v409 = vmul.f32 %v407, %v350
        %v410 = vmul.f32 %v407, %v351
        %v411 = vmul.f32 %v407, %v352
        %v412 = vmul.f32 %v407, %v353
        %v413 = vmul.f32 %v407, %v354
        %420 = vrot.lane.b32.xlu0 %v408, 126
        %v421 = vpop.permute.xlu0 %420
        %422 = vrot.lane.b32.xlu0 %v409, 126
        %v423 = vpop.permute.xlu0 %422
        %424 = vrot.lane.b32.xlu0 %v410, 126
        %v425 = vpop.permute.xlu0 %424
        %426 = vrot.lane.b32.xlu0 %v411, 126
        %v427 = vpop.permute.xlu0 %426
        %428 = vrot.lane.b32.xlu0 %v412, 126
        %v429 = vpop.permute.xlu0 %428
        %430 = vrot.lane.b32.xlu0 %v413, 126
        %v431 = vpop.permute.xlu0 %430
        %v438 = vadd.f32 %v400, %v421
        %v439 = vadd.f32 %v401, %v423
        %v440 = vadd.f32 %v402, %v425
        %v441 = vadd.f32 %v403, %v427
        %v442 = vadd.f32 %v404, %v429
        %v443 = vadd.f32 %v405, %v431
        %vm444 = vcmask 130048
        %445 = vst.msk [vmem:[%s150] sm:$0xff] %vm444, %v438
        %446 = vst.msk [vmem:[%s150 + $0x8] sm:$0xff] %vm444, %v439
        %447 = vst.msk [vmem:[%s150 + $0x10] sm:$0xff] %vm444, %v440
        %448 = vst.msk [vmem:[%s150 + $0x18] sm:$0xff] %vm444, %v441
        %449 = vst.msk [vmem:[%s150 + $0x20] sm:$0xff] %vm444, %v442
        %450 = vst.msk [vmem:[%s150 + $0x28] sm:$0xff] %vm444, %v443
        %s451 = sand.u32 %s72, 1
        %s452 = scalar_lea.sflag [#allocation3], %s451
        %s453 = sand.u32 %s72, 1
        %s454 = smul.addr %s453, 48
        %s455 = scalar_lea.vmem [#allocation5], %s454
        // Predicated region
        $region33: #{tpu_custom_call.1} parent=27 // pred_check
          %p456 = pneg %p82
        $region34: #{tpu_custom_call.1} parent=27 // pred_check_branch
          %458 = sbr.rel (%p456) target = $region36
        $region35: #{tpu_custom_call.1} parent=27 // pred_region
          %s460 = ssub.s32 768, 768
          %461 = vsyncadd %s452, %s460
          %s462 = smul.addr %s17, 6
          %s463 = smul.addr %s462, 128
          %s464 = scalar_lea.hbm %s2, %s463
          %s465 = sshll.u32 %s455, 4
          %s466 = int_to_ptr.vmem [resolvable:$true] %s465
          %471 = dma.vmem_to_hbm [thread:$0]  %s466, 768, %s464, %s452, 128, 128, 8
        $region36: #{tpu_custom_call.1} parent=27 // pred_fallthru
          _
      $region28: #{tpu_custom_call.1} parent=5 // pred_fallthru
        _
      %p472 = scmp.le.s32.totalorder 2, %s12
      // Predicated region
      $region37: #{tpu_custom_call.1} parent=5 // pred_check
        %p473 = pneg %p472
      $region38: #{tpu_custom_call.1} parent=5 // pred_check_branch
        %475 = sbr.rel (%p473) target = $region40
      $region39: #{tpu_custom_call.1} parent=5 // pred_region
        %s476 = ssub.s32 %s12, 2
        // Predicated region
        $region41: #{tpu_custom_call.1} parent=39 // pred_check
          %p477 = pneg %p88
        $region42: #{tpu_custom_call.1} parent=39 // pred_check_branch
          %479 = sbr.rel (%p477) target = $region44
        $region43: #{tpu_custom_call.1} parent=39 // pred_region
          %s480 = sand.u32 %s73, 1
          %s481 = scalar_lea.sflag [#allocation3], %s480
          %s482 = sand.u32 %s73, 1
          %s483 = smul.addr %s482, 48
          %s484 = scalar_lea.vmem [#allocation5], %s483
          %485 = dma.done %s481, 768
        $region44: #{tpu_custom_call.1} parent=39 // pred_fallthru
          _
      $region40: #{tpu_custom_call.1} parent=5 // pred_fallthru
        _
    $region6: #{tpu_custom_call.1} parent=1 // loop_footer
      %s16 = sadd.s32 1, %s12
    $region7: #{tpu_custom_call.1} parent=1 // loop_footer_branch
      %11 = sbr.rel target = $region3
    $region8: #{tpu_custom_call.1} parent=1 // loop_exit
      _
    %486 = vsyncpa [#allocation3], 1
    %s487 = scalar_lea.sflag [#allocation3], 1
    %488 = vsyncpa %s487, 1
    %489 = vsyncpa [#allocation4], 1
    %s490 = scalar_lea.sflag [#allocation4], 1
    %491 = vsyncpa %s490, 1

</llo_original>
